<compile_context>
chip_gen: v5e
topology: v5e:2x2
jax: 0.10.0
libtpu: 0.0.40
codegen_flags: <defaults>
</compile_context>

<pallas_src>
import jax
import jax.numpy as jnp
from jax.experimental import pallas as pl
from jax.experimental.pallas import tpu as pltpu

EPS = 1e-5


def _round_up(x, m):
    return (x + m - 1) // m * m


def _cdiv(a, b):
    return (a + b - 1) // b


def _vmem_limit_bytes():
    """Generation-aware scoped-VMEM limit (v5e/v6e: 128 MiB physical, v7x: 64 MiB)."""
    cap = 128 * 1024 * 1024
    try:
        cap = int(getattr(pltpu.get_tpu_info(), "vmem_capacity_bytes", cap))
    except Exception:
        pass
    return max(32 * 1024 * 1024, min((cap * 3) // 4, 96 * 1024 * 1024))


def _pick_tile_m(m, k_pad, tile_n, budget_bytes):
    """Largest M tile whose pass-1 working set fits the VMEM budget."""
    def need(t):
        return (2 * t * k_pad * 2        # A tile (bf16, double-buffered)
                + 2 * k_pad * tile_n * 2 # W block (bf16, double-buffered)
                + 2 * t * tile_n * 2     # y output tile (bf16, double-buffered)
                + t * tile_n * 4         # f32 matmul result
                + 4 * 8 * tile_n * 4     # stat accumulator blocks
                + (1 << 20))             # slack for compiler-internal scratch
    tm = min(_round_up(m, 8), 2048)
    while tm > 8 and need(tm) > budget_bytes:
        tm = max(_round_up(tm // 2, 8), 8)
    return tm


# ---------------------------------------------------------------------------
# Pass 1: conv matmul per (split, Co, M) tile; store y (bf16) and accumulate
# per-channel sum / sum-of-squares into an (1, 8, tile_n) resident block.
# ---------------------------------------------------------------------------
def _conv_stats_kernel(a_ref, w_ref, y_ref, sum_ref, sumsq_ref):
    @pl.when(pl.program_id(2) == 0)
    def _():
        sum_ref[...] = jnp.zeros_like(sum_ref)
        sumsq_ref[...] = jnp.zeros_like(sumsq_ref)

    # bf16 x bf16 -> f32 accumulation on the MXU.
    y = jnp.dot(a_ref[...], w_ref[...], preferred_element_type=jnp.float32)
    y_ref[...] = y.astype(y_ref.dtype)

    tm, tn = y.shape
    y3 = y.reshape(tm // 8, 8, tn)                     # sublane-preserving split
    sum_ref[...] += jnp.sum(y3, axis=0)[None]          # vreg-wise VPU adds only
    sumsq_ref[...] += jnp.sum(y3 * y3, axis=0)[None]


# ---------------------------------------------------------------------------
# Pass 2: purely elementwise BN affine (single FMA) + ReLU on the stored y.
# Output is aliased onto the y buffer.
# ---------------------------------------------------------------------------
def _bn_relu_kernel(y_ref, scale_ref, shift_ref, o_ref):
    y = y_ref[...].astype(jnp.float32)
    out = y * scale_ref[...] + shift_ref[...]
    o_ref[...] = jnp.maximum(out, 0.0).astype(o_ref.dtype)


def _im2col_s2_p1_k3(x_nhwc):
    """im2col for kernel_size=3, stride=2, padding=1. x_nhwc: (N, H, W, C)."""
    n, h, w, c = x_nhwc.shape
    ho = (h + 2 - 3) // 2 + 1
    wo = (w + 2 - 3) // 2 + 1
    xp = jnp.pad(x_nhwc, ((0, 0), (1, 1), (1, 1), (0, 0)))
    patches = [xp[:, kh:kh + 2 * ho:2, kw:kw + 2 * wo:2, :]
               for kh in range(3) for kw in range(3)]
    a = jnp.concatenate(patches, axis=-1)      # (N, Ho, Wo, 9*C), column order (kh, kw, ci)
    return a.reshape(n * ho * wo, 9 * c), (n, ho, wo)


@jax.jit
def icnet_branch_forward(x_nchw, conv_w_oihw, gamma, beta):
    """Forward of ICNetBranch. x_nchw: (N, Cin, H, W) f32. Returns (N, Cout, Ho, Wo) f32."""
    co, ci, kh, kw = conv_w_oihw.shape
    assert (kh, kw) == (3, 3)

    # --- im2col prologue in bf16 (input transpose is unavoidable for NCHW API) ---
    x_nhwc = jnp.transpose(x_nchw, (0, 2, 3, 1)).astype(jnp.bfloat16)
    a, (n, ho, wo) = _im2col_s2_p1_k3(x_nhwc)          # (M, K) bf16
    m, k = a.shape

    # --- lane/sublane-friendly padding & generation-aware tiling ---
    co_pad = _round_up(co, 128)
    k_pad = _round_up(k, 128)
    if co_pad <= 256:
        tile_n = co_pad
    elif co_pad % 256 == 0:
        tile_n = 256
    else:
        tile_n = 128
    nt = co_pad // tile_n

    vmem_limit = _vmem_limit_bytes()
    tile_m = _pick_tile_m(m, k_pad, tile_n, vmem_limit - (4 << 20))

    mt_total = _cdiv(m, tile_m)
    splits = 2 if mt_total >= 2 else 1                 # 2-way M split for v7x megacore
    mt = _cdiv(mt_total, splits)
    m_pad = splits * mt * tile_m

    a_p = jnp.pad(a, ((0, m_pad - m), (0, k_pad - k)))
    # Weight (Co, Ci, KH, KW) -> (KH, KW, Ci, Co) -> (K, Co), matching im2col column order.
    w_mat = jnp.transpose(conv_w_oihw, (2, 3, 1, 0)).reshape(k, co)
    w_p = jnp.pad(w_mat, ((0, k_pad - k), (0, co_pad - co))).astype(jnp.bfloat16)

    a_spec = pl.BlockSpec((tile_m, k_pad), lambda c, j, i: (c * mt + i, 0))
    w_spec = pl.BlockSpec((k_pad, tile_n), lambda c, j, i: (0, j))
    y_out_spec = pl.BlockSpec((tile_m, tile_n), lambda c, j, i: (c * mt + i, j))
    stat_spec = pl.BlockSpec((1, 8, tile_n), lambda c, j, i: (c, 0, j))

    # --- pass 1: conv matmul; store un-normalized y (bf16); per-channel sum / sumsq ---
    y_flat, sums, sumsqs = pl.pallas_call(
        _conv_stats_kernel,
        out_shape=(jax.ShapeDtypeStruct((m_pad, co_pad), jnp.bfloat16),
                   jax.ShapeDtypeStruct((splits, 8, co_pad), jnp.float32),
                   jax.ShapeDtypeStruct((splits, 8, co_pad), jnp.float32)),
        grid=(splits, nt, mt),
        in_specs=[a_spec, w_spec],
        out_specs=[y_out_spec, stat_spec, stat_spec],
        compiler_params=pltpu.CompilerParams(
            dimension_semantics=("parallel", "parallel", "arbitrary"),
            vmem_limit_bytes=vmem_limit),
    )(a_p, w_p)

    # --- fold BN (training semantics: biased variance over the true M) into scale/shift ---
    # Padded rows/channels are all-zero so they contribute nothing; divide by the true M.
    # NOTE: E[x^2]-E[x]^2 in f32, clamped at 0 to guard against cancellation; per-split /
    # per-sublane partials are summed here which limits f32 accumulation error.
    s1 = jnp.sum(sums, axis=(0, 1))                    # (co_pad,)
    s2 = jnp.sum(sumsqs, axis=(0, 1))                  # (co_pad,)
    inv_m = 1.0 / float(m)
    mean = s1 * inv_m
    var = jnp.maximum(s2 * inv_m - mean * mean, 0.0)
    gamma_p = jnp.pad(gamma.astype(jnp.float32), (0, co_pad - co))
    beta_p = jnp.pad(beta.astype(jnp.float32), (0, co_pad - co))
    scale_vec = gamma_p * jax.lax.rsqrt(var + EPS)
    shift_vec = beta_p - mean * scale_vec
    scale = scale_vec.reshape(1, co_pad)
    shift = shift_vec.reshape(1, co_pad)

    # --- pass 2: elementwise scale/shift + ReLU on stored y, output aliased onto y ---
    mt_all = m_pad // tile_m
    y_spec = pl.BlockSpec((tile_m, tile_n), lambda j, i: (i, j))
    vec_spec = pl.BlockSpec((1, tile_n), lambda j, i: (0, j))
    out_flat = pl.pallas_call(
        _bn_relu_kernel,
        out_shape=jax.ShapeDtypeStruct((m_pad, co_pad), jnp.bfloat16),
        grid=(nt, mt_all),
        in_specs=[y_spec, vec_spec, vec_spec],
        out_specs=y_spec,
        input_output_aliases={0: 0},
        compiler_params=pltpu.CompilerParams(
            dimension_semantics=("parallel", "parallel"),
            vmem_limit_bytes=vmem_limit),
    )(y_flat, scale, shift)

    # --- epilogue: slice real rows/channels, NHWC -> NCHW (in bf16), final f32 cast ---
    out = out_flat[:m, :co].reshape(n, ho, wo, co)
    return jnp.transpose(out, (0, 3, 1, 2)).astype(jnp.float32)


def _reference(x_nchw, conv_w_oihw, gamma, beta):
    y = jax.lax.conv_general_dilated(
        x_nchw, conv_w_oihw, window_strides=(2, 2), padding=((1, 1), (1, 1)),
        dimension_numbers=("NCHW", "OIHW", "NCHW"))
    mean = jnp.mean(y, axis=(0, 2, 3), keepdims=True)
    var = jnp.mean((y - mean) ** 2, axis=(0, 2, 3), keepdims=True)
    y_hat = (y - mean) / jnp.sqrt(var + EPS)
    out = y_hat * gamma.reshape(1, -1, 1, 1) + beta.reshape(1, -1, 1, 1)
    return jnp.maximum(out, 0.0)


if __name__ == "__main__":
    key = jax.random.PRNGKey(0)
    k_x, k_w, k_g, k_b = jax.random.split(key, 4)

    N, C_IN, H, W = 2, 4, 16, 16
    C_OUT = 8

    x = jax.random.normal(k_x, (N, C_IN, H, W), dtype=jnp.float32)
    conv_w = 0.1 * jax.random.normal(k_w, (C_OUT, C_IN, 3, 3), dtype=jnp.float32)
    gamma = 1.0 + 0.1 * jax.random.normal(k_g, (C_OUT,), dtype=jnp.float32)
    beta = 0.1 * jax.random.normal(k_b, (C_OUT,), dtype=jnp.float32)

    out = icnet_branch_forward(x, conv_w, gamma, beta)
    out = jax.block_until_ready(out)

    ref = _reference(x, conv_w, gamma, beta)
    assert out.shape == (N, C_OUT, H // 2, W // 2), out.shape
    # bf16 MXU operands + bf16-stored activations (f32 statistics / affine) trade ~1e-2-level
    # absolute accuracy for ~2x HBM traffic and MXU throughput savings.
    err = float(jnp.max(jnp.abs(out - ref)))
    assert jnp.allclose(out, ref, atol=3e-2, rtol=3e-2), err

    print("KERNEL_OK")
</pallas_src>

<mosaic_0001>
module attributes {stable_mosaic.version = 11 : i64} {
  func.func @_bn_relu_kernel(%arg0: i32, %arg1: i32, %arg2: memref<128x128xbf16, #tpu.memory_space<vmem>>, %arg3: memref<1x128xf32, #tpu.memory_space<vmem>>, %arg4: memref<1x128xf32, #tpu.memory_space<vmem>>, %arg5: memref<128x128xbf16, #tpu.memory_space<vmem>>) attributes {dimension_semantics = [#tpu.dimension_semantics<parallel>, #tpu.dimension_semantics<parallel>], iteration_bounds = array<i64: 1, 1>, scalar_prefetch = 0 : i64, scratch_operands = 0 : i64, tpu.core_type = #tpu.core_type<tc>, window_params = [{transform_indices = @transform_0, window_bounds = array<i64: 128, 128>}, {transform_indices = @transform_1, window_bounds = array<i64: 1, 128>}, {transform_indices = @transform_2, window_bounds = array<i64: 1, 128>}, {transform_indices = @transform_3, window_bounds = array<i64: 128, 128>}]} {
    %c0 = arith.constant 0 : index
    %c0_0 = arith.constant 0 : index
    %0 = vector.load %arg2[%c0, %c0_0] : memref<128x128xbf16, #tpu.memory_space<vmem>>, vector<128x128xbf16>
    %1 = arith.extf %0 : vector<128x128xbf16> to vector<128x128xf32>
    %c0_1 = arith.constant 0 : index
    %c0_2 = arith.constant 0 : index
    %2 = vector.load %arg3[%c0_1, %c0_2] : memref<1x128xf32, #tpu.memory_space<vmem>>, vector<1x128xf32>
    %3 = vector.broadcast %2 : vector<1x128xf32> to vector<128x128xf32>
    %4 = arith.mulf %1, %3 : vector<128x128xf32>
    %c0_3 = arith.constant 0 : index
    %c0_4 = arith.constant 0 : index
    %5 = vector.load %arg4[%c0_3, %c0_4] : memref<1x128xf32, #tpu.memory_space<vmem>>, vector<1x128xf32>
    %6 = vector.broadcast %5 : vector<1x128xf32> to vector<128x128xf32>
    %7 = arith.addf %4, %6 : vector<128x128xf32>
    %cst = arith.constant 0.000000e+00 : f32
    %8 = vector.broadcast %cst : f32 to vector<128x128xf32>
    %9 = arith.maximumf %7, %8 : vector<128x128xf32>
    %10 = arith.truncf %9 : vector<128x128xf32> to vector<128x128xbf16>
    %c0_5 = arith.constant 0 : index
    %c0_6 = arith.constant 0 : index
    %11 = vector.load %arg5[%c0_5, %c0_6] : memref<128x128xbf16, #tpu.memory_space<vmem>>, vector<128x128xbf16>
    tpu.vector_store %arg5[%c0_5, %c0_6], %10 {strides = array<i32>} : memref<128x128xbf16, #tpu.memory_space<vmem>>, vector<128x128xbf16>,
    return
  }
  func.func @transform_0(%arg0: i32, %arg1: i32) -> (i32, i32) {
    %c0_i32 = arith.constant 0 : i32
    return %arg1, %arg0 : i32, i32
  }
  func.func @transform_1(%arg0: i32, %arg1: i32) -> (i32, i32) {
    %c0_i32 = arith.constant 0 : i32
    %c0_i32_0 = arith.constant 0 : i32
    return %c0_i32, %arg0 : i32, i32
  }
  func.func @transform_2(%arg0: i32, %arg1: i32) -> (i32, i32) {
    %c0_i32 = arith.constant 0 : i32
    %c0_i32_0 = arith.constant 0 : i32
    return %c0_i32, %arg0 : i32, i32
  }
  func.func @transform_3(%arg0: i32, %arg1: i32) -> (i32, i32) {
    %c0_i32 = arith.constant 0 : i32
    return %arg1, %arg0 : i32, i32
  }
}

module attributes {stable_mosaic.version = 11 : i64} {
  func.func @_conv_stats_kernel(%arg0: i32, %arg1: i32, %arg2: i32, %arg3: memref<128x128xbf16, #tpu.memory_space<vmem>>, %arg4: memref<128x128xbf16, #tpu.memory_space<vmem>>, %arg5: memref<128x128xbf16, #tpu.memory_space<vmem>>, %arg6: memref<1x8x128xf32, #tpu.memory_space<vmem>>, %arg7: memref<1x8x128xf32, #tpu.memory_space<vmem>>) attributes {dimension_semantics = [#tpu.dimension_semantics<parallel>, #tpu.dimension_semantics<parallel>, #tpu.dimension_semantics<arbitrary>], iteration_bounds = array<i64: 1, 1, 1>, scalar_prefetch = 0 : i64, scratch_operands = 0 : i64, tpu.core_type = #tpu.core_type<tc>, window_params = [{transform_indices = @transform_0, window_bounds = array<i64: 128, 128>}, {transform_indices = @transform_1, window_bounds = array<i64: 128, 128>}, {transform_indices = @transform_2, window_bounds = array<i64: 128, 128>}, {transform_indices = @transform_3, window_bounds = array<i64: 1, 8, 128>}, {transform_indices = @transform_4, window_bounds = array<i64: 1, 8, 128>}]} {
    %c0_i32 = arith.constant 0 : i32
    %0 = arith.cmpi eq, %arg2, %c0_i32 : i32
    %1 = arith.extui %0 : i1 to i32
    %c0_i32_0 = arith.constant 0 : i32
    %2 = arith.cmpi ne, %1, %c0_i32_0 : i32
    scf.if %2 {
      %cst_20 = arith.constant 0.000000e+00 : f32
      %20 = vector.broadcast %cst_20 : f32 to vector<1x8x128xf32>
      %c0_21 = arith.constant 0 : index
      %c0_22 = arith.constant 0 : index
      %c0_23 = arith.constant 0 : index
      %21 = vector.load %arg6[%c0_21, %c0_22, %c0_23] : memref<1x8x128xf32, #tpu.memory_space<vmem>>, vector<1x8x128xf32>
      tpu.vector_store %arg6[%c0_21, %c0_22, %c0_23], %20 {strides = array<i32>} : memref<1x8x128xf32, #tpu.memory_space<vmem>>, vector<1x8x128xf32>,
      %cst_24 = arith.constant 0.000000e+00 : f32
      %22 = vector.broadcast %cst_24 : f32 to vector<1x8x128xf32>
      %c0_25 = arith.constant 0 : index
      %c0_26 = arith.constant 0 : index
      %c0_27 = arith.constant 0 : index
      %23 = vector.load %arg7[%c0_25, %c0_26, %c0_27] : memref<1x8x128xf32, #tpu.memory_space<vmem>>, vector<1x8x128xf32>
      tpu.vector_store %arg7[%c0_25, %c0_26, %c0_27], %22 {strides = array<i32>} : memref<1x8x128xf32, #tpu.memory_space<vmem>>, vector<1x8x128xf32>,
    } else {
    }
    %c0 = arith.constant 0 : index
    %c0_1 = arith.constant 0 : index
    %3 = vector.load %arg3[%c0, %c0_1] : memref<128x128xbf16, #tpu.memory_space<vmem>>, vector<128x128xbf16>
    %c0_2 = arith.constant 0 : index
    %c0_3 = arith.constant 0 : index
    %4 = vector.load %arg4[%c0_2, %c0_3] : memref<128x128xbf16, #tpu.memory_space<vmem>>, vector<128x128xbf16>
    %cst = arith.constant dense<0.000000e+00> : vector<128x128xf32>
    %5 = tpu.matmul %3, %4, %cst {dimension_numbers = #tpu.dot_dimension_numbers<[1], [0], [0], [1], [0, 0, 1, 1], [], []>} : vector<128x128xbf16>, vector<128x128xbf16>, vector<128x128xf32> -> vector<128x128xf32>
    %6 = arith.truncf %5 : vector<128x128xf32> to vector<128x128xbf16>
    %c0_4 = arith.constant 0 : index
    %c0_5 = arith.constant 0 : index
    %7 = vector.load %arg5[%c0_4, %c0_5] : memref<128x128xbf16, #tpu.memory_space<vmem>>, vector<128x128xbf16>
    tpu.vector_store %arg5[%c0_4, %c0_5], %6 {strides = array<i32>} : memref<128x128xbf16, #tpu.memory_space<vmem>>, vector<128x128xbf16>,
    %8 = vector.shape_cast %5 : vector<128x128xf32> to vector<16x8x128xf32>
    %c0_6 = arith.constant 0 : index
    %c0_7 = arith.constant 0 : index
    %c0_8 = arith.constant 0 : index
    %9 = vector.load %arg6[%c0_6, %c0_7, %c0_8] : memref<1x8x128xf32, #tpu.memory_space<vmem>>, vector<1x8x128xf32>
    %cst_9 = arith.constant dense<0.000000e+00> : vector<8x128xf32>
    %10 = vector.multi_reduction <add>, %8, %cst_9 [0] : vector<16x8x128xf32> to vector<8x128xf32>
    %11 = vector.shape_cast %10 : vector<8x128xf32> to vector<1x8x128xf32>
    %12 = arith.addf %9, %11 : vector<1x8x128xf32>
    %c0_10 = arith.constant 0 : index
    %c0_11 = arith.constant 0 : index
    %c0_12 = arith.constant 0 : index
    %13 = vector.load %arg6[%c0_10, %c0_11, %c0_12] : memref<1x8x128xf32, #tpu.memory_space<vmem>>, vector<1x8x128xf32>
    tpu.vector_store %arg6[%c0_10, %c0_11, %c0_12], %12 {strides = array<i32>} : memref<1x8x128xf32, #tpu.memory_space<vmem>>, vector<1x8x128xf32>,
    %c0_13 = arith.constant 0 : index
    %c0_14 = arith.constant 0 : index
    %c0_15 = arith.constant 0 : index
    %14 = vector.load %arg7[%c0_13, %c0_14, %c0_15] : memref<1x8x128xf32, #tpu.memory_space<vmem>>, vector<1x8x128xf32>
    %15 = arith.mulf %8, %8 : vector<16x8x128xf32>
    %cst_16 = arith.constant dense<0.000000e+00> : vector<8x128xf32>
    %16 = vector.multi_reduction <add>, %15, %cst_16 [0] : vector<16x8x128xf32> to vector<8x128xf32>
    %17 = vector.shape_cast %16 : vector<8x128xf32> to vector<1x8x128xf32>
    %18 = arith.addf %14, %17 : vector<1x8x128xf32>
    %c0_17 = arith.constant 0 : index
    %c0_18 = arith.constant 0 : index
    %c0_19 = arith.constant 0 : index
    %19 = vector.load %arg7[%c0_17, %c0_18, %c0_19] : memref<1x8x128xf32, #tpu.memory_space<vmem>>, vector<1x8x128xf32>
    tpu.vector_store %arg7[%c0_17, %c0_18, %c0_19], %18 {strides = array<i32>} : memref<1x8x128xf32, #tpu.memory_space<vmem>>, vector<1x8x128xf32>,
    return
  }
  func.func @transform_0(%arg0: i32, %arg1: i32, %arg2: i32) -> (i32, i32) {
    %c1_i32 = arith.constant 1 : i32
    %0 = arith.muli %arg0, %c1_i32 : i32
    %1 = arith.addi %0, %arg2 : i32
    %c0_i32 = arith.constant 0 : i32
    %c0_i32_0 = arith.constant 0 : i32
    return %1, %c0_i32 : i32, i32
  }
  func.func @transform_1(%arg0: i32, %arg1: i32, %arg2: i32) -> (i32, i32) {
    %c0_i32 = arith.constant 0 : i32
    %c0_i32_0 = arith.constant 0 : i32
    return %c0_i32, %arg1 : i32, i32
  }
  func.func @transform_2(%arg0: i32, %arg1: i32, %arg2: i32) -> (i32, i32) {
    %c1_i32 = arith.constant 1 : i32
    %0 = arith.muli %arg0, %c1_i32 : i32
    %1 = arith.addi %0, %arg2 : i32
    %c0_i32 = arith.constant 0 : i32
    return %1, %arg1 : i32, i32
  }
  func.func @transform_3(%arg0: i32, %arg1: i32, %arg2: i32) -> (i32, i32, i32) {
    %c0_i32 = arith.constant 0 : i32
    %c0_i32_0 = arith.constant 0 : i32
    return %arg0, %c0_i32, %arg1 : i32, i32, i32
  }
  func.func @transform_4(%arg0: i32, %arg1: i32, %arg2: i32) -> (i32, i32, i32) {
    %c0_i32 = arith.constant 0 : i32
    %c0_i32_0 = arith.constant 0 : i32
    return %arg0, %c0_i32, %arg1 : i32, i32, i32
  }
}

</mosaic_0001>

<llo_original>
// kernel: icnet_branch_forward.3
$region0: #{icnet_branch_forward.3}
  #allocation0 [shape = 'u32[]', space=smem, size = 0x4, offset = 0x4, fixed_abs, tag = 'smem constant byte address 0x4 - core index']
  #allocation1 [shape = 'u32[72,128]{1,0:T(1,128)}', space=vmem, size = 0x9000, scoped, tag = 'internal scratch']
  %s0 = inlined_call_operand.vmem [shape: bf16[128,128], index: 0, kind: input, shape index: {}, may-alias: {0,3}]
  %s1 = inlined_call_operand.vmem [shape: f32[1,128], index: 1, kind: input, shape index: {}]
  %s2 = inlined_call_operand.vmem [shape: f32[1,128], index: 2, kind: input, shape index: {}]
  %s3 = inlined_call_operand.vmem [shape: bf16[128,128], index: 3, kind: output, shape index: {}, may-alias: {0,3}]
  %s4 = sld [smem:[#allocation0]]
  $region22: #{icnet_branch_forward.3} parent=0
    _
  %s6 = ssub.s32 1, %s4
  %s7 = scalar_select 0, %s6, %s4
  // Predicated region
  $region2: #{icnet_branch_forward.3} parent=0 // pred_check
    _
  $region3: #{icnet_branch_forward.3} parent=0 // pred_check_branch
    %9 = sbr.rel (0) target = $region5
  $region4: #{icnet_branch_forward.3} parent=0 // pred_region
    _
  $region5: #{icnet_branch_forward.3} parent=0 // pred_fallthru
    _
  // Predicated region
  $region6: #{icnet_branch_forward.3} parent=0 // pred_check
    _
  $region7: #{icnet_branch_forward.3} parent=0 // pred_check_branch
    %11 = sbr.rel (0) target = $region9
  $region8: #{icnet_branch_forward.3} parent=0 // pred_region
    _
  $region9: #{icnet_branch_forward.3} parent=0 // pred_fallthru
    _
  // Predicated region
  $region10: #{icnet_branch_forward.3} parent=0 // pred_check
    _
  $region11: #{icnet_branch_forward.3} parent=0 // pred_check_branch
    %13 = sbr.rel (0) target = $region13
  $region12: #{icnet_branch_forward.3} parent=0 // pred_region
    _
  $region13: #{icnet_branch_forward.3} parent=0 // pred_fallthru
    _
  %v14 = vld [vmem:[%s0] sm:$0xf]
  %v15 = vld [vmem:[%s0 + $0x4] sm:$0xf]
  %v16 = vld [vmem:[%s0 + $0x8] sm:$0xf]
  %v17 = vld [vmem:[%s0 + $0xc] sm:$0xf]
  %v18 = vld [vmem:[%s0 + $0x10] sm:$0xf]
  %v19 = vld [vmem:[%s0 + $0x14] sm:$0xf]
  %v20 = vld [vmem:[%s0 + $0x18] sm:$0xf]
  %v21 = vld [vmem:[%s0 + $0x1c] sm:$0xf]
  %v22 = vld [vmem:[%s0 + $0x20] sm:$0xf]
  %v23 = vld [vmem:[%s0 + $0x24] sm:$0xf]
  %v24 = vld [vmem:[%s0 + $0x28] sm:$0xf]
  %v25 = vld [vmem:[%s0 + $0x2c] sm:$0xf]
  %v26 = vld [vmem:[%s0 + $0x30] sm:$0xf]
  %v27 = vld [vmem:[%s0 + $0x34] sm:$0xf]
  %v28 = vld [vmem:[%s0 + $0x38] sm:$0xf]
  %v29 = vld [vmem:[%s0 + $0x3c] sm:$0xf]
  %v30 = vunpack.c.l.bf16 %v14
  %v31 = vunpack.c.l.bf16 %v15
  %v32 = vunpack.c.l.bf16 %v16
  %v33 = vunpack.c.l.bf16 %v17
  %v34 = vunpack.c.l.bf16 %v18
  %v35 = vunpack.c.l.bf16 %v19
  %v36 = vunpack.c.l.bf16 %v20
  %v37 = vunpack.c.l.bf16 %v21
  %v38 = vunpack.c.l.bf16 %v22
  %v39 = vunpack.c.l.bf16 %v23
  %v40 = vunpack.c.l.bf16 %v24
  %v41 = vunpack.c.l.bf16 %v25
  %v42 = vunpack.c.l.bf16 %v26
  %v43 = vunpack.c.l.bf16 %v27
  %v44 = vunpack.c.l.bf16 %v28
  %v45 = vunpack.c.l.bf16 %v29
  %v46 = vld [vmem:[%s1] sm:$0x1]
  %v48 = vperm.slane %v46, 0
  %v50 = vmul.f32 %v30, %v48
  %v51 = vmul.f32 %v31, %v48
  %v52 = vmul.f32 %v32, %v48
  %v53 = vmul.f32 %v33, %v48
  %v54 = vmul.f32 %v34, %v48
  %v55 = vmul.f32 %v35, %v48
  %v56 = vmul.f32 %v36, %v48
  %v57 = vmul.f32 %v37, %v48
  %v58 = vmul.f32 %v38, %v48
  %v59 = vmul.f32 %v39, %v48
  %v60 = vmul.f32 %v40, %v48
  %v61 = vmul.f32 %v41, %v48
  %v62 = vmul.f32 %v42, %v48
  %v63 = vmul.f32 %v43, %v48
  %v64 = vmul.f32 %v44, %v48
  %v65 = vmul.f32 %v45, %v48
  %v66 = vld [vmem:[%s2] sm:$0x1]
  %v68 = vperm.slane %v66, 0
  %v70 = vadd.f32 %v50, %v68
  %v71 = vadd.f32 %v51, %v68
  %v72 = vadd.f32 %v52, %v68
  %v73 = vadd.f32 %v53, %v68
  %v74 = vadd.f32 %v54, %v68
  %v75 = vadd.f32 %v55, %v68
  %v76 = vadd.f32 %v56, %v68
  %v77 = vadd.f32 %v57, %v68
  %v78 = vadd.f32 %v58, %v68
  %v79 = vadd.f32 %v59, %v68
  %v80 = vadd.f32 %v60, %v68
  %v81 = vadd.f32 %v61, %v68
  %v82 = vadd.f32 %v62, %v68
  %v83 = vadd.f32 %v63, %v68
  %v84 = vadd.f32 %v64, %v68
  %v85 = vadd.f32 %v65, %v68
  %v86 = vmax.f32 %v70, 0.0
  %v87 = vmax.f32 %v71, 0.0
  %v88 = vmax.f32 %v72, 0.0
  %v89 = vmax.f32 %v73, 0.0
  %v90 = vmax.f32 %v74, 0.0
  %v91 = vmax.f32 %v75, 0.0
  %v92 = vmax.f32 %v76, 0.0
  %v93 = vmax.f32 %v77, 0.0
  %v94 = vmax.f32 %v78, 0.0
  %v95 = vmax.f32 %v79, 0.0
  %v96 = vmax.f32 %v80, 0.0
  %v97 = vmax.f32 %v81, 0.0
  %v98 = vmax.f32 %v82, 0.0
  %v99 = vmax.f32 %v83, 0.0
  %v100 = vmax.f32 %v84, 0.0
  %v101 = vmax.f32 %v85, 0.0
  %v102 = vpack.c.bf16 %v86, %v86
  %v103 = vpack.c.bf16 %v87, %v87
  %v104 = vpack.c.bf16 %v88, %v88
  %v105 = vpack.c.bf16 %v89, %v89
  %v106 = vpack.c.bf16 %v90, %v90
  %v107 = vpack.c.bf16 %v91, %v91
  %v108 = vpack.c.bf16 %v92, %v92
  %v109 = vpack.c.bf16 %v93, %v93
  %v110 = vpack.c.bf16 %v94, %v94
  %v111 = vpack.c.bf16 %v95, %v95
  %v112 = vpack.c.bf16 %v96, %v96
  %v113 = vpack.c.bf16 %v97, %v97
  %v114 = vpack.c.bf16 %v98, %v98
  %v115 = vpack.c.bf16 %v99, %v99
  %v116 = vpack.c.bf16 %v100, %v100
  %v117 = vpack.c.bf16 %v101, %v101
  %118 = vst [vmem:[%s3] sm:$0xf] %v102
  %119 = vst [vmem:[%s3 + $0x4] sm:$0xf] %v103
  %120 = vst [vmem:[%s3 + $0x8] sm:$0xf] %v104
  %121 = vst [vmem:[%s3 + $0xc] sm:$0xf] %v105
  %122 = vst [vmem:[%s3 + $0x10] sm:$0xf] %v106
  %123 = vst [vmem:[%s3 + $0x14] sm:$0xf] %v107
  %124 = vst [vmem:[%s3 + $0x18] sm:$0xf] %v108
  %125 = vst [vmem:[%s3 + $0x1c] sm:$0xf] %v109
  %126 = vst [vmem:[%s3 + $0x20] sm:$0xf] %v110
  %127 = vst [vmem:[%s3 + $0x24] sm:$0xf] %v111
  %128 = vst [vmem:[%s3 + $0x28] sm:$0xf] %v112
  %129 = vst [vmem:[%s3 + $0x2c] sm:$0xf] %v113
  %130 = vst [vmem:[%s3 + $0x30] sm:$0xf] %v114
  %131 = vst [vmem:[%s3 + $0x34] sm:$0xf] %v115
  %132 = vst [vmem:[%s3 + $0x38] sm:$0xf] %v116
  %133 = vst [vmem:[%s3 + $0x3c] sm:$0xf] %v117
  // Predicated region
  $region14: #{icnet_branch_forward.3} parent=0 // pred_check
    _
  $region15: #{icnet_branch_forward.3} parent=0 // pred_check_branch
    %135 = sbr.rel (0) target = $region17
  $region16: #{icnet_branch_forward.3} parent=0 // pred_region
    _
  $region17: #{icnet_branch_forward.3} parent=0 // pred_fallthru
    _
  // Predicated region
  $region18: #{icnet_branch_forward.3} parent=0 // pred_check
    _
  $region19: #{icnet_branch_forward.3} parent=0 // pred_check_branch
    %137 = sbr.rel (0) target = $region21
  $region20: #{icnet_branch_forward.3} parent=0 // pred_region
    _
  $region21: #{icnet_branch_forward.3} parent=0 // pred_fallthru
    _

// kernel: icnet_branch_forward.2
$region0: #{icnet_branch_forward.2}
  #allocation0 [shape = 'u32[]', space=smem, size = 0x4, offset = 0x4, fixed_abs, tag = 'smem constant byte address 0x4 - core index']
  #allocation1 [shape = 'u32[72,128]{1,0:T(1,128)}', space=vmem, size = 0x9000, scoped, tag = 'internal scratch']
  %s0 = inlined_call_operand.vmem [shape: bf16[128,128], index: 0, kind: input, shape index: {}]
  %s1 = inlined_call_operand.vmem [shape: bf16[128,128], index: 1, kind: input, shape index: {}]
  %s2 = inlined_call_operand.vmem [shape: bf16[128,128], index: 2, kind: output, shape index: {0}]
  %s3 = inlined_call_operand.vmem [shape: f32[1,8,128], index: 3, kind: output, shape index: {1}]
  %s4 = inlined_call_operand.vmem [shape: f32[1,8,128], index: 4, kind: output, shape index: {2}]
  %5 = xla_tuple %s2, %s3, %s4
  %s6 = sld [smem:[#allocation0]]
  $region38: #{icnet_branch_forward.2} parent=0
    _
  %s8 = ssub.s32 1, %s6
  %s9 = scalar_select 0, %s8, %s6
  // Predicated region
  $region2: #{icnet_branch_forward.2} parent=0 // pred_check
    _
  $region3: #{icnet_branch_forward.2} parent=0 // pred_check_branch
    %11 = sbr.rel (0) target = $region5
  $region4: #{icnet_branch_forward.2} parent=0 // pred_region
    %s12 = sadd.s32 0, 0
    %s13 = smul.u32 16, %s12
    %p14 = scmp.lt.s32.totalorder %s13, 15
    %s15 = scalar_select %p14, %s13, 15
    %s16 = smul.addr %s15, 4
    %s17 = scalar_lea.vmem %s0, %s16
    %s18 = sadd.s32 0, 0
    %s19 = smul.u32 16, %s18
  $region5: #{icnet_branch_forward.2} parent=0 // pred_fallthru
    _
  // Predicated region
  $region6: #{icnet_branch_forward.2} parent=0 // pred_check
    _
  $region7: #{icnet_branch_forward.2} parent=0 // pred_check_branch
    %21 = sbr.rel (0) target = $region9
  $region8: #{icnet_branch_forward.2} parent=0 // pred_region
    _
  $region9: #{icnet_branch_forward.2} parent=0 // pred_fallthru
    _
  %s22 = sadd.s32 0, 0
  %s23 = smul.u32 16, %s22
  %p24 = scmp.lt.s32.totalorder %s23, 15
  %s25 = scalar_select %p24, %s23, 15
  %s26 = smul.addr %s25, 4
  %s27 = scalar_lea.vmem %s0, %s26
  %s28 = sadd.s32 0, 0
  %s29 = smul.u32 16, %s28
  %p30 = scmp.lt.s32.totalorder %s29, 15
  %s31 = scalar_select %p30, %s29, 15
  %s32 = smul.addr %s31, 4
  %s33 = scalar_lea.vmem %s2, %s32
  %s34 = sadd.s32 0, 0
  %s35 = smul.u32 16, %s34
  %p36 = scmp.lt.s32.totalorder %s35, 15
  %s37 = scalar_select %p36, %s35, 15
  %s38 = smul.addr %s37, 4
  %s39 = scalar_lea.vmem %s0, %s38
  %s40 = sadd.s32 0, 0
  %s41 = smul.u32 16, %s40
  %s42 = sadd.s32 0, 0
  %s43 = smul.u32 16, %s42
  %p44 = scmp.lt.s32.totalorder %s43, 15
  %s45 = scalar_select %p44, %s43, 15
  %s46 = smul.addr %s45, 4
  %s47 = scalar_lea.vmem %s2, %s46
  %s48 = sadd.s32 0, 0
  %s49 = smul.u32 16, %s48
  %p50 = scmp.eq.s32.totalorder 0, 0
  // Predicated region
  $region10: #{icnet_branch_forward.2} parent=0 // pred_check
    %p51 = pneg %p50
  $region11: #{icnet_branch_forward.2} parent=0 // pred_check_branch
    %53 = sbr.rel (%p51) target = $region13
  $region12: #{icnet_branch_forward.2} parent=0 // pred_region
    %54 = vst [vmem:[%s3] sm:$0xff] 0.0
    %55 = vst [vmem:[%s4] sm:$0xff] 0.0
  $region13: #{icnet_branch_forward.2} parent=0 // pred_fallthru
    _
  %v56 = vld [vmem:[%s39] sm:$0xf]
  %v57 = vld [vmem:[%s39 + $0x4] sm:$0xf]
  %v58 = vld [vmem:[%s39 + $0x8] sm:$0xf]
  %v59 = vld [vmem:[%s39 + $0xc] sm:$0xf]
  %v60 = vld [vmem:[%s39 + $0x10] sm:$0xf]
  %v61 = vld [vmem:[%s39 + $0x14] sm:$0xf]
  %v62 = vld [vmem:[%s39 + $0x18] sm:$0xf]
  %v63 = vld [vmem:[%s39 + $0x1c] sm:$0xf]
  %v64 = vld [vmem:[%s39 + $0x20] sm:$0xf]
  %v65 = vld [vmem:[%s39 + $0x24] sm:$0xf]
  %v66 = vld [vmem:[%s39 + $0x28] sm:$0xf]
  %v67 = vld [vmem:[%s39 + $0x2c] sm:$0xf]
  %v68 = vld [vmem:[%s39 + $0x30] sm:$0xf]
  %v69 = vld [vmem:[%s39 + $0x34] sm:$0xf]
  %v70 = vld [vmem:[%s39 + $0x38] sm:$0xf]
  %v71 = vld [vmem:[%s39 + $0x3c] sm:$0xf]
  %v72 = vld [vmem:[%s1] sm:$0xf]
  %v73 = vld [vmem:[%s1 + $0x4] sm:$0xf]
  %v74 = vld [vmem:[%s1 + $0x8] sm:$0xf]
  %v75 = vld [vmem:[%s1 + $0xc] sm:$0xf]
  %v76 = vld [vmem:[%s1 + $0x10] sm:$0xf]
  %v77 = vld [vmem:[%s1 + $0x14] sm:$0xf]
  %v78 = vld [vmem:[%s1 + $0x18] sm:$0xf]
  %v79 = vld [vmem:[%s1 + $0x1c] sm:$0xf]
  %v80 = vld [vmem:[%s1 + $0x20] sm:$0xf]
  %v81 = vld [vmem:[%s1 + $0x24] sm:$0xf]
  %v82 = vld [vmem:[%s1 + $0x28] sm:$0xf]
  %v83 = vld [vmem:[%s1 + $0x2c] sm:$0xf]
  %v84 = vld [vmem:[%s1 + $0x30] sm:$0xf]
  %v85 = vld [vmem:[%s1 + $0x34] sm:$0xf]
  %v86 = vld [vmem:[%s1 + $0x38] sm:$0xf]
  %v87 = vld [vmem:[%s1 + $0x3c] sm:$0xf]
  %v104 = vunpack.c.l.b16 %v56
  %v105 = vunpack.c.l.b16 %v57
  %v106 = vunpack.c.l.b16 %v58
  %v107 = vunpack.c.l.b16 %v59
  %v108 = vunpack.c.l.b16 %v60
  %v109 = vunpack.c.l.b16 %v61
  %v110 = vunpack.c.l.b16 %v62
  %v111 = vunpack.c.l.b16 %v63
  %v112 = vunpack.c.l.b16 %v64
  %v113 = vunpack.c.l.b16 %v65
  %v114 = vunpack.c.l.b16 %v66
  %v115 = vunpack.c.l.b16 %v67
  %v116 = vunpack.c.l.b16 %v68
  %v117 = vunpack.c.l.b16 %v69
  %v118 = vunpack.c.l.b16 %v70
  %v119 = vunpack.c.l.b16 %v71
  %v120 = vpack.c.b16 %v105, %v104
  %v121 = vpack.c.b16 %v107, %v106
  %v122 = vpack.c.b16 %v109, %v108
  %v123 = vpack.c.b16 %v111, %v110
  %v124 = vpack.c.b16 %v113, %v112
  %v125 = vpack.c.b16 %v115, %v114
  %v126 = vpack.c.b16 %v117, %v116
  %v127 = vpack.c.b16 %v119, %v118
  %v152 = vunpack.c.l.b16 %v72
  %v153 = vunpack.c.l.b16 %v73
  %v154 = vunpack.c.l.b16 %v74
  %v155 = vunpack.c.l.b16 %v75
  %v156 = vunpack.c.l.b16 %v76
  %v157 = vunpack.c.l.b16 %v77
  %v158 = vunpack.c.l.b16 %v78
  %v159 = vunpack.c.l.b16 %v79
  %v160 = vunpack.c.l.b16 %v80
  %v161 = vunpack.c.l.b16 %v81
  %v162 = vunpack.c.l.b16 %v82
  %v163 = vunpack.c.l.b16 %v83
  %v164 = vunpack.c.l.b16 %v84
  %v165 = vunpack.c.l.b16 %v85
  %v166 = vunpack.c.l.b16 %v86
  %v167 = vunpack.c.l.b16 %v87
  %v168 = vpack.c.b16 %v153, %v152
  %v169 = vpack.c.b16 %v155, %v154
  %v170 = vpack.c.b16 %v157, %v156
  %v171 = vpack.c.b16 %v159, %v158
  %v172 = vpack.c.b16 %v161, %v160
  %v173 = vpack.c.b16 %v163, %v162
  %v174 = vpack.c.b16 %v165, %v164
  %v175 = vpack.c.b16 %v167, %v166
  %184 = vmatpush.bf16.msra.mxu0 %v175
  %185 = vmatpush.bf16.msra.mxu0 %v174
  %186 = vmatpush.bf16.msra.mxu0 %v173
  %187 = vmatpush.bf16.msra.mxu0 %v172
  %188 = vmatpush.bf16.msra.mxu0 %v171
  %189 = vmatpush.bf16.msra.mxu0 %v170
  %190 = vmatpush.bf16.msra.mxu0 %v169
  %191 = vmatpush.bf16.msra.mxu0 %v168
  %192 = vmatmul.bf16.gmra.mxu0 %v120
  %v193 = vpop.f32.mrf.mxu0
  %v194 = vadd.f32 0.0, %v193
  %v195 = vpop.f32.mrf.mxu0
  %v196 = vadd.f32 0.0, %v195
  %197 = vmatmul.bf16.gmra.mxu0 %v121
  %v198 = vpop.f32.mrf.mxu0
  %v199 = vadd.f32 0.0, %v198
  %v200 = vpop.f32.mrf.mxu0
  %v201 = vadd.f32 0.0, %v200
  %202 = vmatmul.bf16.gmra.mxu0 %v122
  %v203 = vpop.f32.mrf.mxu0
  %v204 = vadd.f32 0.0, %v203
  %v205 = vpop.f32.mrf.mxu0
  %v206 = vadd.f32 0.0, %v205
  %207 = vmatmul.bf16.gmra.mxu0 %v123
  %v208 = vpop.f32.mrf.mxu0
  %v209 = vadd.f32 0.0, %v208
  %v210 = vpop.f32.mrf.mxu0
  %v211 = vadd.f32 0.0, %v210
  %212 = vmatmul.bf16.gmra.mxu0 %v124
  %v213 = vpop.f32.mrf.mxu0
  %v214 = vadd.f32 0.0, %v213
  %v215 = vpop.f32.mrf.mxu0
  %v216 = vadd.f32 0.0, %v215
  %217 = vmatmul.bf16.gmra.mxu0 %v125
  %v218 = vpop.f32.mrf.mxu0
  %v219 = vadd.f32 0.0, %v218
  %v220 = vpop.f32.mrf.mxu0
  %v221 = vadd.f32 0.0, %v220
  %222 = vmatmul.bf16.gmra.mxu0 %v126
  %v223 = vpop.f32.mrf.mxu0
  %v224 = vadd.f32 0.0, %v223
  %v225 = vpop.f32.mrf.mxu0
  %v226 = vadd.f32 0.0, %v225
  %227 = vmatmul.bf16.gmra.mxu0 %v127
  %v228 = vpop.f32.mrf.mxu0
  %v229 = vadd.f32 0.0, %v228
  %v230 = vpop.f32.mrf.mxu0
  %v231 = vadd.f32 0.0, %v230
  %232 = vdwg.mxu0
  %v233 = vpack.c.bf16 %v194, %v194
  %v234 = vpack.c.bf16 %v196, %v196
  %v235 = vpack.c.bf16 %v199, %v199
  %v236 = vpack.c.bf16 %v201, %v201
  %v237 = vpack.c.bf16 %v204, %v204
  %v238 = vpack.c.bf16 %v206, %v206
  %v239 = vpack.c.bf16 %v209, %v209
  %v240 = vpack.c.bf16 %v211, %v211
  %v241 = vpack.c.bf16 %v214, %v214
  %v242 = vpack.c.bf16 %v216, %v216
  %v243 = vpack.c.bf16 %v219, %v219
  %v244 = vpack.c.bf16 %v221, %v221
  %v245 = vpack.c.bf16 %v224, %v224
  %v246 = vpack.c.bf16 %v226, %v226
  %v247 = vpack.c.bf16 %v229, %v229
  %v248 = vpack.c.bf16 %v231, %v231
  %249 = vst [vmem:[%s47] sm:$0xf] %v233
  %250 = vst [vmem:[%s47 + $0x4] sm:$0xf] %v234
  %251 = vst [vmem:[%s47 + $0x8] sm:$0xf] %v235
  %252 = vst [vmem:[%s47 + $0xc] sm:$0xf] %v236
  %253 = vst [vmem:[%s47 + $0x10] sm:$0xf] %v237
  %254 = vst [vmem:[%s47 + $0x14] sm:$0xf] %v238
  %255 = vst [vmem:[%s47 + $0x18] sm:$0xf] %v239
  %256 = vst [vmem:[%s47 + $0x1c] sm:$0xf] %v240
  %257 = vst [vmem:[%s47 + $0x20] sm:$0xf] %v241
  %258 = vst [vmem:[%s47 + $0x24] sm:$0xf] %v242
  %259 = vst [vmem:[%s47 + $0x28] sm:$0xf] %v243
  %260 = vst [vmem:[%s47 + $0x2c] sm:$0xf] %v244
  %261 = vst [vmem:[%s47 + $0x30] sm:$0xf] %v245
  %262 = vst [vmem:[%s47 + $0x34] sm:$0xf] %v246
  %263 = vst [vmem:[%s47 + $0x38] sm:$0xf] %v247
  %264 = vst [vmem:[%s47 + $0x3c] sm:$0xf] %v248
  %v265 = vld [vmem:[%s3] sm:$0xff]
  %v266 = vadd.f32 %v194, %v196
  %v267 = vadd.f32 %v266, %v199
  %v268 = vadd.f32 %v267, %v201
  %v269 = vadd.f32 %v268, %v204
  %v270 = vadd.f32 %v269, %v206
  %v271 = vadd.f32 %v270, %v209
  %v272 = vadd.f32 %v271, %v211
  %v273 = vadd.f32 %v272, %v214
  %v274 = vadd.f32 %v273, %v216
  %v275 = vadd.f32 %v274, %v219
  %v276 = vadd.f32 %v275, %v221
  %v277 = vadd.f32 %v276, %v224
  %v278 = vadd.f32 %v277, %v226
  %v279 = vadd.f32 %v278, %v229
  %v280 = vadd.f32 %v279, %v231
  %v281 = vadd.f32 %v265, %v280
  %282 = vst [vmem:[%s3] sm:$0xff] %v281
  %v283 = vld [vmem:[%s4] sm:$0xff]
  %v284 = vmul.f32 %v194, %v194
  %v285 = vmul.f32 %v196, %v196
  %v286 = vmul.f32 %v199, %v199
  %v287 = vmul.f32 %v201, %v201
  %v288 = vmul.f32 %v204, %v204
  %v289 = vmul.f32 %v206, %v206
  %v290 = vmul.f32 %v209, %v209
  %v291 = vmul.f32 %v211, %v211
  %v292 = vmul.f32 %v214, %v214
  %v293 = vmul.f32 %v216, %v216
  %v294 = vmul.f32 %v219, %v219
  %v295 = vmul.f32 %v221, %v221
  %v296 = vmul.f32 %v224, %v224
  %v297 = vmul.f32 %v226, %v226
  %v298 = vmul.f32 %v229, %v229
  %v299 = vmul.f32 %v231, %v231
  %v300 = vadd.f32 %v284, %v285
  %v301 = vadd.f32 %v300, %v286
  %v302 = vadd.f32 %v301, %v287
  %v303 = vadd.f32 %v302, %v288
  %v304 = vadd.f32 %v303, %v289
  %v305 = vadd.f32 %v304, %v290
  %v306 = vadd.f32 %v305, %v291
  %v307 = vadd.f32 %v306, %v292
  %v308 = vadd.f32 %v307, %v293
  %v309 = vadd.f32 %v308, %v294
  %v310 = vadd.f32 %v309, %v295
  %v311 = vadd.f32 %v310, %v296
  %v312 = vadd.f32 %v311, %v297
  %v313 = vadd.f32 %v312, %v298
  %v314 = vadd.f32 %v313, %v299
  %v315 = vadd.f32 %v283, %v314
  %316 = vst [vmem:[%s4] sm:$0xff] %v315
  %s317 = sadd.s32 0, 0
  %s318 = smul.u32 16, %s317
  %p319 = scmp.lt.s32.totalorder %s318, 15
  %s320 = scalar_select %p319, %s318, 15
  %s321 = smul.addr %s320, 4
  %s322 = scalar_lea.vmem %s2, %s321
  // Predicated region
  $region14: #{icnet_branch_forward.2} parent=0 // pred_check
    _
  $region15: #{icnet_branch_forward.2} parent=0 // pred_check_branch
    %324 = sbr.rel (0) target = $region17
  $region16: #{icnet_branch_forward.2} parent=0 // pred_region
    %s325 = sadd.s32 0, 0
    %s326 = smul.u32 16, %s325
  $region17: #{icnet_branch_forward.2} parent=0 // pred_fallthru
    _
  // Predicated region
  $region18: #{icnet_branch_forward.2} parent=0 // pred_check
    _
  $region19: #{icnet_branch_forward.2} parent=0 // pred_check_branch
    %328 = sbr.rel (0) target = $region21
  $region20: #{icnet_branch_forward.2} parent=0 // pred_region
    _
  $region21: #{icnet_branch_forward.2} parent=0 // pred_fallthru
    _
  // Predicated region
  $region22: #{icnet_branch_forward.2} parent=0 // pred_check
    _
  $region23: #{icnet_branch_forward.2} parent=0 // pred_check_branch
    %330 = sbr.rel (0) target = $region25
  $region24: #{icnet_branch_forward.2} parent=0 // pred_region
    _
  $region25: #{icnet_branch_forward.2} parent=0 // pred_fallthru
    _
  // Predicated region
  $region26: #{icnet_branch_forward.2} parent=0 // pred_check
    _
  $region27: #{icnet_branch_forward.2} parent=0 // pred_check_branch
    %332 = sbr.rel (0) target = $region29
  $region28: #{icnet_branch_forward.2} parent=0 // pred_region
    %s333 = sadd.s32 0, 0
    %s334 = smul.u32 16, %s333
    %p335 = scmp.lt.s32.totalorder %s334, 15
    %s336 = scalar_select %p335, %s334, 15
    %s337 = smul.addr %s336, 4
    %s338 = scalar_lea.vmem %s2, %s337
  $region29: #{icnet_branch_forward.2} parent=0 // pred_fallthru
    _
  // Predicated region
  $region30: #{icnet_branch_forward.2} parent=0 // pred_check
    _
  $region31: #{icnet_branch_forward.2} parent=0 // pred_check_branch
    %340 = sbr.rel (0) target = $region33
  $region32: #{icnet_branch_forward.2} parent=0 // pred_region
    _
  $region33: #{icnet_branch_forward.2} parent=0 // pred_fallthru
    _
  // Predicated region
  $region34: #{icnet_branch_forward.2} parent=0 // pred_check
    _
  $region35: #{icnet_branch_forward.2} parent=0 // pred_check_branch
    %342 = sbr.rel (0) target = $region37
  $region36: #{icnet_branch_forward.2} parent=0 // pred_region
    _
  $region37: #{icnet_branch_forward.2} parent=0 // pred_fallthru
    _

</llo_original>
